<compile_context>
chip_gen: v5e
topology: v5e:2x2
jax: 0.10.0
libtpu: 0.0.40
codegen_flags: <defaults>
</compile_context>

<pallas_src>
import functools

import jax
import jax.numpy as jnp
from jax.experimental import pallas as pl
from jax.experimental.pallas import tpu as pltpu


# ----------------------------------------------------------------------------
# Chunk planning (all static Python — P, N, D are compile-time constants).
# ----------------------------------------------------------------------------

_MAX_CHUNKS_PER_SLAB = 8          # cap on concurrent DMAs per operand
_MIN_CHUNK_BYTES = 512 * 1024     # don't split slabs into chunks smaller than this
_SMALL_FAST_PATH_BYTES = 256 * 1024  # below this total size, use jnp.concatenate

_SUBLANE_PACK = {4: 8, 2: 16, 1: 32}  # itemsize -> rows per packed sublane group


def _round_up(x, m):
    return ((x + m - 1) // m) * m


def _plan_chunks(rows, dst_offset, sublane, row_bytes,
                 min_chunk_bytes, max_chunks):
    """Split `rows` into (src_start, dst_start, nrows) chunks.

    Chunk sizes are multiples of the sublane packing (except possibly the
    last chunk) so each DMA source stays tile-aligned.
    """
    if rows == 0:
        return []
    min_rows = max(sublane, _round_up(-(-min_chunk_bytes // row_bytes), sublane))
    num_chunks = max(1, min(max_chunks, rows // min_rows))
    chunk_rows = max(sublane, _round_up(-(-rows // num_chunks), sublane))
    chunks = []
    start = 0
    while start < rows:
        n = min(chunk_rows, rows - start)
        chunks.append((start, dst_offset + start, n))
        start += n
    return chunks


# ----------------------------------------------------------------------------
# Kernel: pure DMA-engine HBM -> HBM concat, chunked for engine parallelism.
# ----------------------------------------------------------------------------

def _concat_scores_dma_kernel(pos_chunks, neg_chunks,
                              pos_ref, neg_ref, out_ref, sem):
    """pos -> out[:P], neg -> out[P:P+N], each slab as >=1 concurrent DMAs.

    All refs live in HBM (memory_space=pl.ANY); no VMEM staging and no vector
    load/store slots — the copies run entirely on the DMA engines, all started
    before any wait so they overlap with each other.
    """
    copies = []
    idx = 0
    for (src_start, dst_start, rows) in pos_chunks:
        copies.append(pltpu.make_async_copy(
            pos_ref.at[pl.ds(src_start, rows), :],
            out_ref.at[pl.ds(dst_start, rows), :],
            sem.at[idx]))
        idx += 1
    for (src_start, dst_start, rows) in neg_chunks:
        copies.append(pltpu.make_async_copy(
            neg_ref.at[pl.ds(src_start, rows), :],
            out_ref.at[pl.ds(dst_start, rows), :],
            sem.at[idx]))
        idx += 1
    for cp in copies:   # issue everything first ...
        cp.start()
    for cp in copies:   # ... then wait, so all DMAs are in flight together
        cp.wait()


# ----------------------------------------------------------------------------
# Wrapper: Pallas equivalent of ContrastiveLoss.calculate_scores.
# ----------------------------------------------------------------------------

def calculate_scores(pos_scores, neg_scores=None, *,
                     small_fast_path_bytes=_SMALL_FAST_PATH_BYTES,
                     min_chunk_bytes=_MIN_CHUNK_BYTES,
                     max_chunks_per_slab=_MAX_CHUNKS_PER_SLAB):
    """Returns concat([pos_scores, neg_scores], axis=0), or pos if neg is None.

    pos_scores: [P, D], neg_scores: [N, D] (same D, same dtype).
    """
    if neg_scores is None:
        return pos_scores

    P, D = pos_scores.shape
    N, Dn = neg_scores.shape
    assert D == Dn, "score_dim mismatch"
    assert pos_scores.dtype == neg_scores.dtype, "dtype mismatch"

    # Degenerate slabs: no zero-length DMAs, no kernel launch.
    if P == 0:
        return neg_scores
    if N == 0:
        return pos_scores

    itemsize = jnp.dtype(pos_scores.dtype).itemsize
    total_bytes = (P + N) * D * itemsize

    # Small-input fast path: launch overhead would dominate; let XLA fuse it.
    if total_bytes <= small_fast_path_bytes:
        return jnp.concatenate([pos_scores, neg_scores], axis=0)

    sublane = _SUBLANE_PACK.get(itemsize, 8)
    row_bytes = D * itemsize
    pos_chunks = _plan_chunks(P, 0, sublane, row_bytes,
                              min_chunk_bytes, max_chunks_per_slab)
    neg_chunks = _plan_chunks(N, P, sublane, row_bytes,
                              min_chunk_bytes, max_chunks_per_slab)
    n_dmas = len(pos_chunks) + len(neg_chunks)

    kernel = functools.partial(_concat_scores_dma_kernel, pos_chunks, neg_chunks)

    return pl.pallas_call(
        kernel,
        out_shape=jax.ShapeDtypeStruct((P + N, D), pos_scores.dtype),
        # Raw HBM refs: no auto-DMA into VMEM, zero VMEM footprint.
        in_specs=[
            pl.BlockSpec(memory_space=pl.ANY),
            pl.BlockSpec(memory_space=pl.ANY),
        ],
        out_specs=pl.BlockSpec(memory_space=pl.ANY),
        scratch_shapes=[pltpu.SemaphoreType.DMA((n_dmas,))],
        # Pure memory traffic: read + write of every byte once.
        cost_estimate=pl.CostEstimate(
            flops=0, transcendentals=0, bytes_accessed=2 * total_bytes),
    )(pos_scores, neg_scores)


# ----------------------------------------------------------------------------
# Self-test
# ----------------------------------------------------------------------------

if __name__ == "__main__":
    key = jax.random.PRNGKey(0)
    k_pos, k_neg, k_pos2, k_neg2 = jax.random.split(key, 4)

    # Small shapes: P=8, N=8, score_dim=128 (f32 sublane-aligned, lane-dense).
    pos = jax.random.normal(k_pos, (8, 128), dtype=jnp.float32)
    neg = jax.random.normal(k_neg, (8, 128), dtype=jnp.float32)
    ref = jnp.concatenate([pos, neg], axis=0)

    # Path 1: tiny input -> XLA fast path (no kernel launch).
    scores_small = jax.block_until_ready(calculate_scores(pos, neg))
    assert scores_small.shape == (16, 128)
    assert jnp.allclose(scores_small, ref), "fast-path concat mismatch"

    # Path 2: same tiny input, Pallas DMA-concat kernel forced (threshold=0).
    scores_pallas = jax.block_until_ready(
        calculate_scores(pos, neg, small_fast_path_bytes=0))
    assert jnp.allclose(scores_pallas, ref), "pallas concat mismatch"

    # Path 3: moderate input -> Pallas kernel with multiple concurrent DMAs
    # per slab (chunk threshold lowered so chunking is exercised at small size).
    pos2 = jax.random.normal(k_pos2, (256, 256), dtype=jnp.float32)
    neg2 = jax.random.normal(k_neg2, (128, 256), dtype=jnp.float32)
    ref2 = jnp.concatenate([pos2, neg2], axis=0)
    scores_chunked = jax.block_until_ready(
        calculate_scores(pos2, neg2,
                         small_fast_path_bytes=0,
                         min_chunk_bytes=64 * 1024))
    assert scores_chunked.shape == (384, 256)
    assert jnp.allclose(scores_chunked, ref2), "chunked concat mismatch"

    # Path 4: neg_scores is None -> passthrough (no kernel launch).
    scores_pos_only = jax.block_until_ready(calculate_scores(pos, None))
    assert jnp.allclose(scores_pos_only, pos), "passthrough mismatch"

    # Path 5: zero-row negative slab -> returns pos directly (no zero DMA).
    neg_empty = jnp.zeros((0, 128), dtype=jnp.float32)
    scores_empty_neg = jax.block_until_ready(calculate_scores(pos, neg_empty))
    assert jnp.allclose(scores_empty_neg, pos), "empty-neg mismatch"

    print("KERNEL_OK")
</pallas_src>

<mosaic_0001>
module attributes {stable_mosaic.version = 11 : i64} {
  func.func @_concat_scores_dma_kernel(%arg0: memref<8x128xf32, #tpu.memory_space<any>>, %arg1: memref<8x128xf32, #tpu.memory_space<any>>, %arg2: memref<16x128xf32, #tpu.memory_space<any>>, %arg3: memref<2x!tpu.dma_semaphore, #tpu.memory_space<semaphore_mem>>) attributes {dimension_semantics = [], scalar_prefetch = 0 : i64, scratch_operands = 1 : i64, tpu.core_type = #tpu.core_type<tc>} {
    %c0_i32 = arith.constant 0 : i32
    %c0_i32_0 = arith.constant 0 : i32
    %c0_i32_1 = arith.constant 0 : i32
    %0 = tpu.memref_slice %arg0[%c0_i32_0, %c0_i32_1] : memref<8x128xf32, #tpu.memory_space<any>> -> memref<8x128xf32, #tpu.memory_space<any>>
    %c0_i32_2 = arith.constant 0 : i32
    %c0_i32_3 = arith.constant 0 : i32
    %1 = tpu.memref_slice %arg2[%c0_i32_2, %c0_i32_3] : memref<16x128xf32, #tpu.memory_space<any>> -> memref<8x128xf32, #tpu.memory_space<any>>
    %2 = tpu.memref_slice %arg3[%c0_i32] : memref<2x!tpu.dma_semaphore, #tpu.memory_space<semaphore_mem>> -> memref<1x!tpu.dma_semaphore, #tpu.memory_space<semaphore_mem>>
    %3 = tpu.memref_squeeze %2 : memref<1x!tpu.dma_semaphore, #tpu.memory_space<semaphore_mem>> -> memref<!tpu.dma_semaphore, #tpu.memory_space<semaphore_mem>>
    tpu.enqueue_dma source(%0 : memref<8x128xf32, #tpu.memory_space<any>>) target(%1 : memref<8x128xf32, #tpu.memory_space<any>>) target_semaphore(%3 : memref<!tpu.dma_semaphore, #tpu.memory_space<semaphore_mem>>)
    %c1_i32 = arith.constant 1 : i32
    %c0_i32_4 = arith.constant 0 : i32
    %c0_i32_5 = arith.constant 0 : i32
    %4 = tpu.memref_slice %arg1[%c0_i32_4, %c0_i32_5] : memref<8x128xf32, #tpu.memory_space<any>> -> memref<8x128xf32, #tpu.memory_space<any>>
    %c8_i32 = arith.constant 8 : i32
    %c0_i32_6 = arith.constant 0 : i32
    %5 = tpu.memref_slice %arg2[%c8_i32, %c0_i32_6] : memref<16x128xf32, #tpu.memory_space<any>> -> memref<8x128xf32, #tpu.memory_space<any>>
    %6 = tpu.memref_slice %arg3[%c1_i32] : memref<2x!tpu.dma_semaphore, #tpu.memory_space<semaphore_mem>> -> memref<1x!tpu.dma_semaphore, #tpu.memory_space<semaphore_mem>>
    %7 = tpu.memref_squeeze %6 : memref<1x!tpu.dma_semaphore, #tpu.memory_space<semaphore_mem>> -> memref<!tpu.dma_semaphore, #tpu.memory_space<semaphore_mem>>
    tpu.enqueue_dma source(%4 : memref<8x128xf32, #tpu.memory_space<any>>) target(%5 : memref<8x128xf32, #tpu.memory_space<any>>) target_semaphore(%7 : memref<!tpu.dma_semaphore, #tpu.memory_space<semaphore_mem>>)
    %c0_i32_7 = arith.constant 0 : i32
    %c0_i32_8 = arith.constant 0 : i32
    %c0_i32_9 = arith.constant 0 : i32
    %8 = tpu.memref_slice %arg0[%c0_i32_8, %c0_i32_9] : memref<8x128xf32, #tpu.memory_space<any>> -> memref<8x128xf32, #tpu.memory_space<any>>
    %c0_i32_10 = arith.constant 0 : i32
    %c0_i32_11 = arith.constant 0 : i32
    %9 = tpu.memref_slice %arg2[%c0_i32_10, %c0_i32_11] : memref<16x128xf32, #tpu.memory_space<any>> -> memref<8x128xf32, #tpu.memory_space<any>>
    %10 = tpu.memref_slice %arg3[%c0_i32_7] : memref<2x!tpu.dma_semaphore, #tpu.memory_space<semaphore_mem>> -> memref<1x!tpu.dma_semaphore, #tpu.memory_space<semaphore_mem>>
    %11 = tpu.memref_squeeze %10 : memref<1x!tpu.dma_semaphore, #tpu.memory_space<semaphore_mem>> -> memref<!tpu.dma_semaphore, #tpu.memory_space<semaphore_mem>>
    tpu.wait_dma2 semaphore(%11 : memref<!tpu.dma_semaphore, #tpu.memory_space<semaphore_mem>>) src(%8 : memref<8x128xf32, #tpu.memory_space<any>>) dst(%9 : memref<8x128xf32, #tpu.memory_space<any>>)
    %c1_i32_12 = arith.constant 1 : i32
    %c0_i32_13 = arith.constant 0 : i32
    %c0_i32_14 = arith.constant 0 : i32
    %12 = tpu.memref_slice %arg1[%c0_i32_13, %c0_i32_14] : memref<8x128xf32, #tpu.memory_space<any>> -> memref<8x128xf32, #tpu.memory_space<any>>
    %c8_i32_15 = arith.constant 8 : i32
    %c0_i32_16 = arith.constant 0 : i32
    %13 = tpu.memref_slice %arg2[%c8_i32_15, %c0_i32_16] : memref<16x128xf32, #tpu.memory_space<any>> -> memref<8x128xf32, #tpu.memory_space<any>>
    %14 = tpu.memref_slice %arg3[%c1_i32_12] : memref<2x!tpu.dma_semaphore, #tpu.memory_space<semaphore_mem>> -> memref<1x!tpu.dma_semaphore, #tpu.memory_space<semaphore_mem>>
    %15 = tpu.memref_squeeze %14 : memref<1x!tpu.dma_semaphore, #tpu.memory_space<semaphore_mem>> -> memref<!tpu.dma_semaphore, #tpu.memory_space<semaphore_mem>>
    tpu.wait_dma2 semaphore(%15 : memref<!tpu.dma_semaphore, #tpu.memory_space<semaphore_mem>>) src(%12 : memref<8x128xf32, #tpu.memory_space<any>>) dst(%13 : memref<8x128xf32, #tpu.memory_space<any>>)
    return
  }
}

</mosaic_0001>

<llo_original>
// kernel: tpu_custom_call.1
$region0: #{tpu_custom_call.1}
  #allocation0 [shape = 'u32[]', space=smem, size = 0x4, offset = 0x4, fixed_abs, tag = 'smem constant byte address 0x4 - core index']
  #allocation1 [shape = 'u32[72,128]{1,0:T(1,128)}', space=vmem, size = 0x9000, scoped, tag = 'internal scratch']
  #allocation2 [shape = 's32[2]{0}', space=sflag, size = 0x8, scoped, tag = 'scratch operand']
  #allocation3 [shape = 's32[]', space=sflag, size = 0x4, offset = 0, fixed_abs, tag = 'sflag constant byte address 0x0 - dummy sync flag']
  #allocation4 [shape = 'u32[0]{0}', space=smem, size = 0, offset = 0, fixed_abs, tag = 'smem constant byte address 0x0 - null']
  #allocation5 [shape = 's32[]', space=sflag, size = 0x4, offset = 0, fixed_abs, tag = 'sflag constant byte address 0x0 - dummy sync flag']
  #allocation6 [shape = 'u32[0]{0}', space=smem, size = 0, offset = 0, fixed_abs, tag = 'smem constant byte address 0x0 - null']
  %s0 = inlined_call_operand.hbm [shape: f32[8,128], index: 0, kind: input, shape index: {}]
  %s1 = inlined_call_operand.hbm [shape: f32[8,128], index: 1, kind: input, shape index: {}]
  %s2 = inlined_call_operand.hbm [shape: f32[16,128], index: 2, kind: output, shape index: {}]
  %s3 = sld [smem:[#allocation0]]
  $region2: #{tpu_custom_call.1} parent=0
    _
  %s5 = ssub.s32 1, %s3
  %s6 = scalar_select 0, %s5, %s3
  %s8 = sshll.u32 1, 14
  %s9 = sxor.u32 4294967295, %s8
  %s11 = sshll.u32 %s0, 4
  %s12 = int_to_ptr.hbm [resolvable:$true] %s11
  %s13 = sshll.u32 %s2, 4
  %s14 = int_to_ptr.hbm [resolvable:$true] %s13
  %17 = dma.general %s12, 128, %s14, [#allocation2], [#allocation3], [#allocation4], 0, 0
  %s18 = scalar_lea.hbm %s2, 8
  %s19 = scalar_lea.sflag [#allocation2], 1
  %s21 = sshll.u32 1, 14
  %s22 = sxor.u32 4294967295, %s21
  %s24 = sshll.u32 %s1, 4
  %s25 = int_to_ptr.hbm [resolvable:$true] %s24
  %s26 = sshll.u32 %s18, 4
  %s27 = int_to_ptr.hbm [resolvable:$true] %s26
  %30 = dma.general %s25, 128, %s27, %s19, [#allocation5], [#allocation6], 0, 0
  %s31 = smul.u32 8, 1
  %s32 = sshll.u32 %s31, 4
  %33 = dma.done [#allocation2], %s32
  %s34 = sshll.u32 %s31, 4
  %35 = dma.done %s19, %s34
  %36 = vsyncmov [#allocation2]
  %s37 = vpop.sfrf %36
  %p38 = scmp.eq.s32.totalorder %s37, 0
  %p39 = pneg %p38
  %41 = shalt.err (%p39)
  %s42 = scalar_lea.sflag [#allocation2], 1
  %43 = vsyncmov %s42
  %s44 = vpop.sfrf %43
  %p45 = scmp.eq.s32.totalorder %s44, 0
  %p46 = pneg %p45
  %48 = shalt.err (%p46)

</llo_original>
